<compile_context>
chip_gen: v7x
topology: tpu7x:2x2x1
jax: 0.10.0
libtpu: 0.0.40
codegen_flags: <defaults>
</compile_context>

<pallas_src>
import math
from typing import NamedTuple

import jax
import jax.numpy as jnp
from jax import lax
from jax.experimental import pallas as pl
from jax.experimental.pallas import tpu as pltpu

_INV_SQRT2 = 1.0 / math.sqrt(2.0)


def _round_up(v: int, m: int) -> int:
    return ((v + m - 1) // m) * m


def _cdiv(a: int, b: int) -> int:
    return (a + b - 1) // b


# --------------------------------------------------------------------------
# VMEM budgeting / tile planning
# --------------------------------------------------------------------------
def _vmem_capacity_bytes() -> int:
    """Physical VMEM per TensorCore; conservative fallback if unknown."""
    try:
        cap = int(getattr(pltpu.get_tpu_info(), "vmem_capacity_bytes", 0))
        if cap > 0:
            return cap
    except Exception:
        pass
    return 64 * 1024 * 1024  # v7x per-TC size (smallest current generation)


def _xo_tile_bytes(tm: int, e_pad: int) -> int:
    # double-buffered bf16 x tile + double-buffered f32 output tile
    return 2 * tm * e_pad * 2 + 2 * tm * e_pad * 4


class _Geometry(NamedTuple):
    E_pad: int
    H_pad: int
    th: int            # hidden tile (== H_pad on the resident-weights path)
    weight_bytes: int  # double-buffered bf16 weight-tile bytes
    bias_bytes: int
    budget: int
    cap: int


def _plan_weight_geometry(E: int, H: int, *, th_target: int = 512,
                          force_stream: bool = False) -> _Geometry:
    E_pad = _round_up(E, 128)
    H_base = _round_up(H, 128)
    cap = _vmem_capacity_bytes()
    budget = int(cap * 0.70)                      # headroom for compiler scratch
    bias_bytes = 2 * 4 * (H_base + E_pad)         # double-buffered f32 biases
    nominal_xo = _xo_tile_bytes(256, E_pad)       # nominal row tile for decision

    # Fast path: keep W1 and W2 fully VMEM-resident (constant index maps).
    resident_w = 2 * 2 * 2 * E_pad * H_base       # W1+W2, bf16, double-buffered
    if not force_stream and resident_w + bias_bytes + nominal_xo <= budget:
        return _Geometry(E_pad, H_base, H_base, resident_w, bias_bytes, budget, cap)

    # Streamed path: balanced 128-multiple hidden tile; pad H up to a multiple
    # of it (never collapse the tile via gcd).
    th_try = max(128, min(th_target, H_base))
    while True:
        n_h = _cdiv(H_base, th_try)
        th = _round_up(_cdiv(H_base, n_h), 128)
        H_pad = n_h * th
        w_bytes = 2 * 2 * 2 * E_pad * th
        if w_bytes + bias_bytes + nominal_xo <= budget or th <= 128:
            return _Geometry(E_pad, H_pad, th, w_bytes, bias_bytes, budget, cap)
        th_try = max(128, th_try // 2)


def _plan_rows(M: int, geo: _Geometry, *, tm_target: int = 512):
    """Row tile: as large as the VMEM budget allows, balanced against M."""
    avail = max(geo.budget - geo.weight_bytes - geo.bias_bytes,
                _xo_tile_bytes(16, geo.E_pad))
    tm_cap = max(16, (avail // (12 * geo.E_pad)) // 16 * 16)
    tm_max = max(16, min(tm_target, tm_cap))
    n_m = _cdiv(M, tm_max)
    tm = _round_up(_cdiv(M, n_m), 16)             # bf16 sublane packing: x16
    M_pad = n_m * tm
    needed = geo.weight_bytes + geo.bias_bytes + _xo_tile_bytes(tm, geo.E_pad)
    vmem_limit = int(min(geo.cap * 0.9, max(needed * 1.3, 32 * 1024 * 1024)))
    return tm, M_pad, n_m, vmem_limit


# --------------------------------------------------------------------------
# Kernel
# --------------------------------------------------------------------------
def _ffn_kernel(x_ref, w1_ref, b1_ref, w2_ref, b2_ref, o_ref):
    # x_ref : (tm, E_pad) bf16    w1_ref: (E_pad, th) bf16    b1_ref: (1, th) f32
    # w2_ref: (th, E_pad) bf16    b2_ref: (1, E_pad)  f32     o_ref : (tm, E_pad) f32
    j = pl.program_id(1)

    # fc1 slice of the hidden dim (f32 accumulation on the MXU) + bias.
    h = jnp.dot(x_ref[...], w1_ref[...], preferred_element_type=jnp.float32)
    h = h + b1_ref[...]
    # exact erf GELU in f32 (matches torch.nn.GELU() default)
    h = 0.5 * h * (1.0 + lax.erf(h * _INV_SQRT2))
    # fc2 partial product for this hidden slice.
    part = jnp.dot(h.astype(w2_ref.dtype), w2_ref[...],
                   preferred_element_type=jnp.float32)

    # Accumulate directly into the VMEM-resident f32 output block (no scratch).
    @pl.when(j == 0)
    def _():
        o_ref[...] = part

    @pl.when(j > 0)
    def _():
        o_ref[...] += part

    @pl.when(j == pl.num_programs(1) - 1)
    def _():
        o_ref[...] += b2_ref[...]


def _ffn_pallas(x_p, w1_p, b1_p, w2_p, b2_p, *, tm, th, vmem_limit):
    M_pad, E_pad = x_p.shape
    H_pad = w1_p.shape[1]
    n_m, n_h = M_pad // tm, H_pad // th

    cost = pl.CostEstimate(
        flops=4 * M_pad * E_pad * H_pad,          # two matmuls, 2*M*E*H each
        transcendentals=M_pad * H_pad,            # erf in the GELU
        bytes_accessed=(x_p.size * 2
                        + n_m * (w1_p.size + w2_p.size) * 2  # weights re-streamed per row tile
                        + (b1_p.size + b2_p.size) * 4
                        + M_pad * E_pad * 4),
    )

    return pl.pallas_call(
        _ffn_kernel,
        out_shape=jax.ShapeDtypeStruct((M_pad, E_pad), jnp.float32),
        grid_spec=pltpu.PrefetchScalarGridSpec(
            num_scalar_prefetch=0,
            grid=(n_m, n_h),
            in_specs=[
                pl.BlockSpec((tm, E_pad), lambda i, j: (i, 0)),   # x row tile
                pl.BlockSpec((E_pad, th), lambda i, j: (0, j)),   # W1 column tile
                pl.BlockSpec((1, th),     lambda i, j: (0, j)),   # b1 slice
                pl.BlockSpec((th, E_pad), lambda i, j: (j, 0)),   # W2 row tile
                pl.BlockSpec((1, E_pad),  lambda i, j: (0, 0)),   # b2
            ],
            out_specs=pl.BlockSpec((tm, E_pad), lambda i, j: (i, 0)),
        ),
        compiler_params=pltpu.CompilerParams(
            dimension_semantics=("parallel", "arbitrary"),
            vmem_limit_bytes=vmem_limit),
        cost_estimate=cost,
    )(x_p, w1_p, b1_p, w2_p, b2_p)


# --------------------------------------------------------------------------
# Module wrapper
# --------------------------------------------------------------------------
class FeedForwardPallas:
    """JAX/Pallas equivalent of the PyTorch FeedForward module."""

    def __init__(self, embed_dim: int, hidden_dim: int, key, *,
                 tm_target: int = 512, th_target: int = 512,
                 force_stream: bool = False):
        self.embed_dim = embed_dim
        self.hidden_dim = hidden_dim
        self.tm_target = tm_target

        k1, k2, k3, k4 = jax.random.split(key, 4)
        bound1 = 1.0 / math.sqrt(embed_dim)
        bound2 = 1.0 / math.sqrt(hidden_dim)
        # Master params in f32 (pre-transposed vs PyTorch's (out, in) layout).
        self.w1 = jax.random.uniform(k1, (embed_dim, hidden_dim),
                                     jnp.float32, -bound1, bound1)
        self.b1 = jax.random.uniform(k2, (hidden_dim,),
                                     jnp.float32, -bound1, bound1)
        self.w2 = jax.random.uniform(k3, (hidden_dim, embed_dim),
                                     jnp.float32, -bound2, bound2)
        self.b2 = jax.random.uniform(k4, (embed_dim,),
                                     jnp.float32, -bound2, bound2)

        # Pad + cast ONCE at init; the kernel consumes bf16 weights, f32 biases.
        geo = _plan_weight_geometry(embed_dim, hidden_dim,
                                    th_target=th_target,
                                    force_stream=force_stream)
        self.geo = geo
        ep, hp = geo.E_pad - embed_dim, geo.H_pad - hidden_dim
        self.w1_p = jnp.pad(self.w1, ((0, ep), (0, hp))).astype(jnp.bfloat16)
        self.w2_p = jnp.pad(self.w2, ((0, hp), (0, ep))).astype(jnp.bfloat16)
        self.b1_p = jnp.pad(self.b1, (0, hp)).reshape(1, geo.H_pad).astype(jnp.float32)
        self.b2_p = jnp.pad(self.b2, (0, ep)).reshape(1, geo.E_pad).astype(jnp.float32)

    def __call__(self, x):
        lead = x.shape[:-1]
        x2d = x.reshape(-1, self.embed_dim)
        M, E = x2d.shape
        geo = self.geo

        tm, M_pad, _, vmem_limit = _plan_rows(M, geo, tm_target=self.tm_target)
        # TODO(synk): skip this cast if the caller already holds bf16 activations.
        x_p = jnp.pad(x2d, ((0, M_pad - M), (0, geo.E_pad - E))).astype(jnp.bfloat16)

        out = _ffn_pallas(x_p, self.w1_p, self.b1_p, self.w2_p, self.b2_p,
                          tm=tm, th=geo.th, vmem_limit=vmem_limit)
        return out[:M, :E].reshape(*lead, self.embed_dim)


# ---------------------------- references ---------------------------------
def _reference_f32(x, w1, b1, w2, b2):
    h = x @ w1 + b1
    h = 0.5 * h * (1.0 + lax.erf(h / math.sqrt(2.0)))
    return h @ w2 + b2


def _reference_bf16_path(x, w1, b1, w2, b2):
    # Same cast strategy the kernel uses (bf16 MXU inputs, f32 accum/GELU).
    xb, w1b, w2b = (t.astype(jnp.bfloat16) for t in (x, w1, w2))
    h = jnp.dot(xb, w1b, preferred_element_type=jnp.float32) + b1
    h = 0.5 * h * (1.0 + lax.erf(h / math.sqrt(2.0)))
    return jnp.dot(h.astype(jnp.bfloat16), w2b,
                   preferred_element_type=jnp.float32) + b2


if __name__ == "__main__":
    # --- test 1: small module-spec shapes; resident-weights fast path ------
    k_param, k_x = jax.random.split(jax.random.PRNGKey(0))
    batch, seq, embed_dim, hidden_dim = 2, 8, 32, 64
    ffn = FeedForwardPallas(embed_dim, hidden_dim, k_param)
    x = jax.random.normal(k_x, (batch, seq, embed_dim), jnp.float32)

    y = jax.block_until_ready(ffn(x))
    assert y.shape == (batch, seq, embed_dim)

    x2d = x.reshape(-1, embed_dim)
    y2d = y.reshape(-1, embed_dim)
    y_bf = _reference_bf16_path(x2d, ffn.w1, ffn.b1, ffn.w2, ffn.b2)
    y_f32 = _reference_f32(x2d, ffn.w1, ffn.b1, ffn.w2, ffn.b2)
    assert jnp.allclose(y2d, y_bf, atol=3e-3, rtol=3e-3), "mismatch vs bf16-path ref"
    assert jnp.allclose(y2d, y_f32, atol=5e-2, rtol=5e-2), "mismatch vs f32 ref"

    # --- test 2: padding + multi-row-tile + streamed (multi-th) path -------
    k_param2, k_x2 = jax.random.split(jax.random.PRNGKey(1))
    batch2, seq2, embed2, hidden2 = 4, 128, 80, 640   # M=512 -> 4 row tiles
    ffn2 = FeedForwardPallas(embed2, hidden2, k_param2,
                             tm_target=128, th_target=256, force_stream=True)
    x2 = jax.random.normal(k_x2, (batch2, seq2, embed2), jnp.float32)

    y2 = jax.block_until_ready(ffn2(x2))
    assert y2.shape == (batch2, seq2, embed2)

    x2_2d = x2.reshape(-1, embed2)
    y2_2d = y2.reshape(-1, embed2)
    y2_bf = _reference_bf16_path(x2_2d, ffn2.w1, ffn2.b1, ffn2.w2, ffn2.b2)
    y2_f32 = _reference_f32(x2_2d, ffn2.w1, ffn2.b1, ffn2.w2, ffn2.b2)
    assert jnp.allclose(y2_2d, y2_bf, atol=3e-3, rtol=3e-3), "mismatch vs bf16-path ref (2)"
    assert jnp.allclose(y2_2d, y2_f32, atol=5e-2, rtol=5e-2), "mismatch vs f32 ref (2)"

    print("KERNEL_OK")
</pallas_src>

<mosaic_0001>
module attributes {stable_mosaic.version = 11 : i64} {
  func.func @_ffn_kernel(%arg0: i32, %arg1: i32, %arg2: memref<16x128xbf16, #tpu.memory_space<vmem>>, %arg3: memref<128x128xbf16, #tpu.memory_space<vmem>>, %arg4: memref<1x128xf32, #tpu.memory_space<vmem>>, %arg5: memref<128x128xbf16, #tpu.memory_space<vmem>>, %arg6: memref<1x128xf32, #tpu.memory_space<vmem>>, %arg7: memref<16x128xf32, #tpu.memory_space<vmem>>) attributes {dimension_semantics = [#tpu.dimension_semantics<parallel>, #tpu.dimension_semantics<arbitrary>], iteration_bounds = array<i64: 1, 1>, scalar_prefetch = 0 : i64, scratch_operands = 0 : i64, tpu.core_type = #tpu.core_type<tc>, window_params = [{transform_indices = @transform_0, window_bounds = array<i64: 16, 128>}, {transform_indices = @transform_1, window_bounds = array<i64: 128, 128>}, {transform_indices = @transform_2, window_bounds = array<i64: 1, 128>}, {transform_indices = @transform_3, window_bounds = array<i64: 128, 128>}, {pipeline_mode = #tpu.pipeline_mode<synchronous>, transform_indices = @transform_4, window_bounds = array<i64: 1, 128>}, {transform_indices = @transform_5, window_bounds = array<i64: 16, 128>}]} {
    %c0 = arith.constant 0 : index
    %c0_0 = arith.constant 0 : index
    %0 = vector.load %arg2[%c0, %c0_0] : memref<16x128xbf16, #tpu.memory_space<vmem>>, vector<16x128xbf16>
    %c0_1 = arith.constant 0 : index
    %c0_2 = arith.constant 0 : index
    %1 = vector.load %arg3[%c0_1, %c0_2] : memref<128x128xbf16, #tpu.memory_space<vmem>>, vector<128x128xbf16>
    %cst = arith.constant dense<0.000000e+00> : vector<16x128xf32>
    %2 = tpu.matmul %0, %1, %cst {dimension_numbers = #tpu.dot_dimension_numbers<[1], [0], [0], [1], [0, 0, 1, 1], [], []>} : vector<16x128xbf16>, vector<128x128xbf16>, vector<16x128xf32> -> vector<16x128xf32>
    %c0_3 = arith.constant 0 : index
    %c0_4 = arith.constant 0 : index
    %3 = vector.load %arg4[%c0_3, %c0_4] : memref<1x128xf32, #tpu.memory_space<vmem>>, vector<1x128xf32>
    %4 = vector.broadcast %3 : vector<1x128xf32> to vector<16x128xf32>
    %5 = arith.addf %2, %4 : vector<16x128xf32>
    %cst_5 = arith.constant 5.000000e-01 : f32
    %6 = vector.broadcast %cst_5 : f32 to vector<16x128xf32>
    %7 = arith.mulf %6, %5 : vector<16x128xf32>
    %cst_6 = arith.constant 0.707106769 : f32
    %8 = vector.broadcast %cst_6 : f32 to vector<16x128xf32>
    %9 = arith.mulf %5, %8 : vector<16x128xf32>
    %10 = math.erf %9 : vector<16x128xf32>
    %cst_7 = arith.constant 1.000000e+00 : f32
    %11 = vector.broadcast %cst_7 : f32 to vector<16x128xf32>
    %12 = arith.addf %11, %10 : vector<16x128xf32>
    %13 = arith.mulf %7, %12 : vector<16x128xf32>
    %14 = arith.truncf %13 : vector<16x128xf32> to vector<16x128xbf16>
    %c0_8 = arith.constant 0 : index
    %c0_9 = arith.constant 0 : index
    %15 = vector.load %arg5[%c0_8, %c0_9] : memref<128x128xbf16, #tpu.memory_space<vmem>>, vector<128x128xbf16>
    %cst_10 = arith.constant dense<0.000000e+00> : vector<16x128xf32>
    %16 = tpu.matmul %14, %15, %cst_10 {dimension_numbers = #tpu.dot_dimension_numbers<[1], [0], [0], [1], [0, 0, 1, 1], [], []>} : vector<16x128xbf16>, vector<128x128xbf16>, vector<16x128xf32> -> vector<16x128xf32>
    %c0_i32 = arith.constant 0 : i32
    %17 = arith.cmpi eq, %arg1, %c0_i32 : i32
    %18 = arith.extui %17 : i1 to i32
    %c0_i32_11 = arith.constant 0 : i32
    %19 = arith.cmpi ne, %18, %c0_i32_11 : i32
    scf.if %19 {
      %c0_16 = arith.constant 0 : index
      %c0_17 = arith.constant 0 : index
      %26 = vector.load %arg7[%c0_16, %c0_17] : memref<16x128xf32, #tpu.memory_space<vmem>>, vector<16x128xf32>
      tpu.vector_store %arg7[%c0_16, %c0_17], %16 {strides = array<i32>} : memref<16x128xf32, #tpu.memory_space<vmem>>, vector<16x128xf32>,
    } else {
    }
    %c0_i32_12 = arith.constant 0 : i32
    %20 = arith.cmpi sgt, %arg1, %c0_i32_12 : i32
    %21 = arith.extui %20 : i1 to i32
    %c0_i32_13 = arith.constant 0 : i32
    %22 = arith.cmpi ne, %21, %c0_i32_13 : i32
    scf.if %22 {
      %c0_16 = arith.constant 0 : index
      %c0_17 = arith.constant 0 : index
      %26 = vector.load %arg7[%c0_16, %c0_17] : memref<16x128xf32, #tpu.memory_space<vmem>>, vector<16x128xf32>
      %27 = arith.addf %26, %16 : vector<16x128xf32>
      %c0_18 = arith.constant 0 : index
      %c0_19 = arith.constant 0 : index
      %28 = vector.load %arg7[%c0_18, %c0_19] : memref<16x128xf32, #tpu.memory_space<vmem>>, vector<16x128xf32>
      tpu.vector_store %arg7[%c0_18, %c0_19], %27 {strides = array<i32>} : memref<16x128xf32, #tpu.memory_space<vmem>>, vector<16x128xf32>,
    } else {
    }
    %c0_i32_14 = arith.constant 0 : i32
    %23 = arith.cmpi eq, %arg1, %c0_i32_14 : i32
    %24 = arith.extui %23 : i1 to i32
    %c0_i32_15 = arith.constant 0 : i32
    %25 = arith.cmpi ne, %24, %c0_i32_15 : i32
    scf.if %25 {
      %c0_16 = arith.constant 0 : index
      %c0_17 = arith.constant 0 : index
      %26 = vector.load %arg7[%c0_16, %c0_17] : memref<16x128xf32, #tpu.memory_space<vmem>>, vector<16x128xf32>
      %c0_18 = arith.constant 0 : index
      %c0_19 = arith.constant 0 : index
      %27 = vector.load %arg6[%c0_18, %c0_19] : memref<1x128xf32, #tpu.memory_space<vmem>>, vector<1x128xf32>
      %28 = vector.broadcast %27 : vector<1x128xf32> to vector<16x128xf32>
      %29 = arith.addf %26, %28 : vector<16x128xf32>
      %c0_20 = arith.constant 0 : index
      %c0_21 = arith.constant 0 : index
      %30 = vector.load %arg7[%c0_20, %c0_21] : memref<16x128xf32, #tpu.memory_space<vmem>>, vector<16x128xf32>
      tpu.vector_store %arg7[%c0_20, %c0_21], %29 {strides = array<i32>} : memref<16x128xf32, #tpu.memory_space<vmem>>, vector<16x128xf32>,
    } else {
    }
    return
  }
  func.func @transform_0(%arg0: i32, %arg1: i32) -> (i32, i32) {
    %c0_i32 = arith.constant 0 : i32
    %c0_i32_0 = arith.constant 0 : i32
    return %arg0, %c0_i32 : i32, i32
  }
  func.func @transform_1(%arg0: i32, %arg1: i32) -> (i32, i32) {
    %c0_i32 = arith.constant 0 : i32
    %c0_i32_0 = arith.constant 0 : i32
    return %c0_i32, %arg1 : i32, i32
  }
  func.func @transform_2(%arg0: i32, %arg1: i32) -> (i32, i32) {
    %c0_i32 = arith.constant 0 : i32
    %c0_i32_0 = arith.constant 0 : i32
    return %c0_i32, %arg1 : i32, i32
  }
  func.func @transform_3(%arg0: i32, %arg1: i32) -> (i32, i32) {
    %c0_i32 = arith.constant 0 : i32
    %c0_i32_0 = arith.constant 0 : i32
    return %arg1, %c0_i32 : i32, i32
  }
  func.func @transform_4(%arg0: i32, %arg1: i32) -> (i32, i32) {
    %c0_i32 = arith.constant 0 : i32
    %c0_i32_0 = arith.constant 0 : i32
    %c0_i32_1 = arith.constant 0 : i32
    return %c0_i32, %c0_i32_0 : i32, i32
  }
  func.func @transform_5(%arg0: i32, %arg1: i32) -> (i32, i32) {
    %c0_i32 = arith.constant 0 : i32
    %c0_i32_0 = arith.constant 0 : i32
    return %arg0, %c0_i32 : i32, i32
  }
}

</mosaic_0001>

<llo_original>
// kernel: tpu_custom_call.1
$region0: #{tpu_custom_call.1}
  #allocation0 [shape = 'u32[]', space=smem, size = 0x4, offset = 0x4, fixed_abs, tag = 'smem constant byte address 0x4 - core index']
  #allocation1 [shape = 'u32[144,128]{1,0:T(1,128)}', space=vmem, size = 0x12000, scoped, tag = 'internal scratch']
  %s0 = inlined_call_operand.hbm [shape: bf16[16,128], index: 0, kind: input, shape index: {}]
  %s1 = inlined_call_operand.hbm [shape: bf16[128,128], index: 1, kind: input, shape index: {}]
  %s2 = inlined_call_operand.vmem [shape: f32[1,128], index: 2, kind: input, shape index: {}]
  %s3 = inlined_call_operand.hbm [shape: bf16[128,128], index: 3, kind: input, shape index: {}]
  %s4 = inlined_call_operand.vmem [shape: f32[1,128], index: 4, kind: input, shape index: {}]
  %s5 = inlined_call_operand.hbm [shape: f32[16,128], index: 5, kind: output, shape index: {}]
  %s6 = sld [smem:[#allocation0]]
  $region54: #{tpu_custom_call.1} parent=0
    _
  %s8 = ssub.s32 1, %s6
  %s9 = scalar_select 0, %s8, %s6
  $region1: #{tpu_custom_call.1} parent=0
    #allocation2 [shape = 'u8[4096]{0}', space=vmem, size = 0x1000, scoped, tag = 'input window, operand 0, single buffered']
    #allocation3 [shape = 's32[1]{0}', space=sflag, size = 0x4, scoped, tag = 'scoped memory for tpu_custom_call.1']
    #allocation4 [shape = 's32[1]{0}', space=sflag, size = 0x4, scoped, tag = 'scoped memory for tpu_custom_call.1']
    #allocation5 [shape = 'u8[32768]{0}', space=vmem, size = 0x8000, scoped, tag = 'input window, operand 1, single buffered']
    #allocation6 [shape = 's32[1]{0}', space=sflag, size = 0x4, scoped, tag = 'scoped memory for tpu_custom_call.1']
    #allocation7 [shape = 'u8[32768]{0}', space=vmem, size = 0x8000, scoped, tag = 'input window, operand 3, single buffered']
    #allocation8 [shape = 'u8[8192]{0}', space=vmem, size = 0x2000, scoped, tag = 'output window, operand 0, single buffered']
    %10 = vsyncpa [#allocation3], 0
    %11 = vsyncpa [#allocation6], 0
    %12 = vsyncpa [#allocation4], 0
    // Predicated region
    $region2: #{tpu_custom_call.1} parent=1 // pred_check
      _
    $region3: #{tpu_custom_call.1} parent=1 // pred_check_branch
      %14 = sbr.rel (0) target = $region5
    $region4: #{tpu_custom_call.1} parent=1 // pred_region
      %s16 = ssub.s32 128, 128
      %17 = vsyncadd [#allocation3], %s16
      %s18 = sshll.u32 [#allocation2], 4
      %s19 = int_to_ptr.vmem [resolvable:$true] %s18
      %24 = dma.hbm_to_vmem [thread:$0]  %s0, 128, %s19, [#allocation3], 64, 64, 4
    $region5: #{tpu_custom_call.1} parent=1 // pred_fallthru
      _
    // Predicated region
    $region6: #{tpu_custom_call.1} parent=1 // pred_check
      _
    $region7: #{tpu_custom_call.1} parent=1 // pred_check_branch
      %26 = sbr.rel (0) target = $region9
    $region8: #{tpu_custom_call.1} parent=1 // pred_region
      %s28 = ssub.s32 1024, 1024
      %29 = vsyncadd [#allocation6], %s28
      %s30 = sshll.u32 [#allocation5], 4
      %s31 = int_to_ptr.vmem [resolvable:$true] %s30
      %36 = dma.hbm_to_vmem [thread:$0]  %s1, 1024, %s31, [#allocation6], 64, 64, 4
    $region9: #{tpu_custom_call.1} parent=1 // pred_fallthru
      _
    // Predicated region
    $region10: #{tpu_custom_call.1} parent=1 // pred_check
      _
    $region11: #{tpu_custom_call.1} parent=1 // pred_check_branch
      %38 = sbr.rel (0) target = $region13
    $region12: #{tpu_custom_call.1} parent=1 // pred_region
      _
    $region13: #{tpu_custom_call.1} parent=1 // pred_fallthru
      _
    // Predicated region
    $region14: #{tpu_custom_call.1} parent=1 // pred_check
      _
    $region15: #{tpu_custom_call.1} parent=1 // pred_check_branch
      %40 = sbr.rel (0) target = $region17
    $region16: #{tpu_custom_call.1} parent=1 // pred_region
      %s42 = ssub.s32 1024, 1024
      %43 = vsyncadd [#allocation6], %s42
      %s44 = sshll.u32 [#allocation7], 4
      %s45 = int_to_ptr.vmem [resolvable:$true] %s44
      %50 = dma.hbm_to_vmem [thread:$0]  %s3, 1024, %s45, [#allocation6], 64, 64, 4
    $region17: #{tpu_custom_call.1} parent=1 // pred_fallthru
      _
    // Predicated region
    $region18: #{tpu_custom_call.1} parent=1 // pred_check
      _
    $region19: #{tpu_custom_call.1} parent=1 // pred_check_branch
      %52 = sbr.rel (0) target = $region21
    $region20: #{tpu_custom_call.1} parent=1 // pred_region
      _
    $region21: #{tpu_custom_call.1} parent=1 // pred_fallthru
      _
    // Predicated region
    $region22: #{tpu_custom_call.1} parent=1 // pred_check
      _
    $region23: #{tpu_custom_call.1} parent=1 // pred_check_branch
      %54 = sbr.rel (0) target = $region25
    $region24: #{tpu_custom_call.1} parent=1 // pred_region
      %55 = dma.done [#allocation3], 128
    $region25: #{tpu_custom_call.1} parent=1 // pred_fallthru
      _
    // Predicated region
    $region26: #{tpu_custom_call.1} parent=1 // pred_check
      _
    $region27: #{tpu_custom_call.1} parent=1 // pred_check_branch
      %57 = sbr.rel (0) target = $region29
    $region28: #{tpu_custom_call.1} parent=1 // pred_region
      %58 = dma.done [#allocation6], 1024
    $region29: #{tpu_custom_call.1} parent=1 // pred_fallthru
      _
    // Predicated region
    $region30: #{tpu_custom_call.1} parent=1 // pred_check
      _
    $region31: #{tpu_custom_call.1} parent=1 // pred_check_branch
      %60 = sbr.rel (0) target = $region33
    $region32: #{tpu_custom_call.1} parent=1 // pred_region
      %61 = dma.done [#allocation6], 1024
    $region33: #{tpu_custom_call.1} parent=1 // pred_fallthru
      _
    %v63 = vld [vmem:[#allocation2] sm:$0xf]
    %v64 = vld [vmem:[#allocation2 + $0x4] sm:$0xf]
    %v65 = vld [vmem:[#allocation5] sm:$0xf]
    %v66 = vld [vmem:[#allocation5 + $0x4] sm:$0xf]
    %v67 = vld [vmem:[#allocation5 + $0x8] sm:$0xf]
    %v68 = vld [vmem:[#allocation5 + $0xc] sm:$0xf]
    %v69 = vld [vmem:[#allocation5 + $0x10] sm:$0xf]
    %v70 = vld [vmem:[#allocation5 + $0x14] sm:$0xf]
    %v71 = vld [vmem:[#allocation5 + $0x18] sm:$0xf]
    %v72 = vld [vmem:[#allocation5 + $0x1c] sm:$0xf]
    %v73 = vld [vmem:[#allocation5 + $0x20] sm:$0xf]
    %v74 = vld [vmem:[#allocation5 + $0x24] sm:$0xf]
    %v75 = vld [vmem:[#allocation5 + $0x28] sm:$0xf]
    %v76 = vld [vmem:[#allocation5 + $0x2c] sm:$0xf]
    %v77 = vld [vmem:[#allocation5 + $0x30] sm:$0xf]
    %v78 = vld [vmem:[#allocation5 + $0x34] sm:$0xf]
    %v79 = vld [vmem:[#allocation5 + $0x38] sm:$0xf]
    %v80 = vld [vmem:[#allocation5 + $0x3c] sm:$0xf]
    %v81 = vld [vmem:[%s2] sm:$0x1]
    %v83 = vlaneseq
    %v84 = vshrl.u32 %v83, 7
    %v85 = vsub.s32 0, %v84
    %v86 = vrot.slane %v81, %v85
    %v90 = vunpack.c.l.b16 %v63
    %v91 = vunpack.c.l.b16 %v64
    %v92 = vpack.c.b16 %v91, %v90
    %v110 = vunpack.c.l.b16 %v65
    %v111 = vunpack.c.l.b16 %v66
    %v112 = vunpack.c.l.b16 %v67
    %v113 = vunpack.c.l.b16 %v68
    %v114 = vunpack.c.l.b16 %v69
    %v115 = vunpack.c.l.b16 %v70
    %v116 = vunpack.c.l.b16 %v71
    %v117 = vunpack.c.l.b16 %v72
    %v118 = vunpack.c.l.b16 %v73
    %v119 = vunpack.c.l.b16 %v74
    %v120 = vunpack.c.l.b16 %v75
    %v121 = vunpack.c.l.b16 %v76
    %v122 = vunpack.c.l.b16 %v77
    %v123 = vunpack.c.l.b16 %v78
    %v124 = vunpack.c.l.b16 %v79
    %v125 = vunpack.c.l.b16 %v80
    %v126 = vpack.c.b16 %v111, %v110
    %v127 = vpack.c.b16 %v113, %v112
    %v128 = vpack.c.b16 %v115, %v114
    %v129 = vpack.c.b16 %v117, %v116
    %v130 = vpack.c.b16 %v119, %v118
    %v131 = vpack.c.b16 %v121, %v120
    %v132 = vpack.c.b16 %v123, %v122
    %v133 = vpack.c.b16 %v125, %v124
    %142 = vmatprep.subr.bf16.mxu0 0
    %143 = vmatpush1.bf16.msra.mxu0 %v126
    %144 = vmatprep.subr.bf16.mxu0 0
    %145 = vmatpush1.bf16.msra.mxu0 %v127
    %146 = vmatprep.subr.bf16.mxu0 0
    %147 = vmatpush1.bf16.msra.mxu0 %v128
    %148 = vmatprep.subr.bf16.mxu0 0
    %149 = vmatpush1.bf16.msra.mxu0 %v129
    %150 = vmatprep.subr.bf16.mxu0 0
    %151 = vmatpush1.bf16.msra.mxu0 %v130
    %152 = vmatprep.subr.bf16.mxu0 0
    %153 = vmatpush1.bf16.msra.mxu0 %v131
    %154 = vmatprep.subr.bf16.mxu0 0
    %155 = vmatpush1.bf16.msra.mxu0 %v132
    %156 = vmatprep.subr.bf16.mxu0 0
    %157 = vmatpush1.bf16.msra.mxu0 %v133
    %158 = vmatprep.subr.bf16.mxu0 0
    %159 = vmatpush1.bf16.msra.mxu0 0
    %160 = vmatprep.subr.bf16.mxu0 0
    %161 = vmatpush1.bf16.msra.mxu0 0
    %162 = vmatprep.subr.bf16.mxu0 0
    %163 = vmatpush1.bf16.msra.mxu0 0
    %164 = vmatprep.subr.bf16.mxu0 0
    %165 = vmatpush1.bf16.msra.mxu0 0
    %166 = vmatprep.subr.bf16.mxu0 0
    %167 = vmatpush1.bf16.msra.mxu0 0
    %168 = vmatprep.subr.bf16.mxu0 0
    %169 = vmatpush1.bf16.msra.mxu0 0
    %170 = vmatprep.subr.bf16.mxu0 0
    %171 = vmatpush1.bf16.msra.mxu0 0
    %172 = vmatprep.subr.bf16.mxu0 0
    %173 = vmatpush1.bf16.msra.mxu0 0
    %174 = vmatprep.mubr.bf16.mxu0 0
    %175 = vmatmul.mubr.bf16.gmra.mrb[0].mxu0 %v92
    %v176 = vpop.f32.mrb[0].mxu0
    %v177 = vadd.f32 %v86, %v176
    %v178 = vpop.f32.mrb[0].mxu0
    %v179 = vpop.f32.mrb[0].mxu0
    %v180 = vadd.f32 %v86, %v179
    %v181 = vpop.f32.mrb[0].mxu0
    %182 = vdwg.mxu0
    %v183 = vmul.f32 %v177, 0.5
    %v184 = vmul.f32 %v180, 0.5
    %v185 = vmul.f32 %v177, 0.70710677
    %v186 = vmul.f32 %v180, 0.70710677
    %v187 = verf.f32.pop %v185
    %v188 = verf.f32.pop %v186
    %v189 = vadd.f32 %v187, 1.0
    %v190 = vadd.f32 %v188, 1.0
    %v191 = vmul.f32 %v183, %v189
    %v192 = vmul.f32 %v184, %v190
    %v193 = vpack.c.bf16 %v192, %v191
    %v194 = vld [vmem:[#allocation7] sm:$0xf]
    %v195 = vld [vmem:[#allocation7 + $0x4] sm:$0xf]
    %v196 = vld [vmem:[#allocation7 + $0x8] sm:$0xf]
    %v197 = vld [vmem:[#allocation7 + $0xc] sm:$0xf]
    %v198 = vld [vmem:[#allocation7 + $0x10] sm:$0xf]
    %v199 = vld [vmem:[#allocation7 + $0x14] sm:$0xf]
    %v200 = vld [vmem:[#allocation7 + $0x18] sm:$0xf]
    %v201 = vld [vmem:[#allocation7 + $0x1c] sm:$0xf]
    %v202 = vld [vmem:[#allocation7 + $0x20] sm:$0xf]
    %v203 = vld [vmem:[#allocation7 + $0x24] sm:$0xf]
    %v204 = vld [vmem:[#allocation7 + $0x28] sm:$0xf]
    %v205 = vld [vmem:[#allocation7 + $0x2c] sm:$0xf]
    %v206 = vld [vmem:[#allocation7 + $0x30] sm:$0xf]
    %v207 = vld [vmem:[#allocation7 + $0x34] sm:$0xf]
    %v208 = vld [vmem:[#allocation7 + $0x38] sm:$0xf]
    %v209 = vld [vmem:[#allocation7 + $0x3c] sm:$0xf]
    %v226 = vunpack.c.l.b16 %v194
    %v227 = vunpack.c.l.b16 %v195
    %v228 = vunpack.c.l.b16 %v196
    %v229 = vunpack.c.l.b16 %v197
    %v230 = vunpack.c.l.b16 %v198
    %v231 = vunpack.c.l.b16 %v199
    %v232 = vunpack.c.l.b16 %v200
    %v233 = vunpack.c.l.b16 %v201
    %v234 = vunpack.c.l.b16 %v202
    %v235 = vunpack.c.l.b16 %v203
    %v236 = vunpack.c.l.b16 %v204
    %v237 = vunpack.c.l.b16 %v205
    %v238 = vunpack.c.l.b16 %v206
    %v239 = vunpack.c.l.b16 %v207
    %v240 = vunpack.c.l.b16 %v208
    %v241 = vunpack.c.l.b16 %v209
    %v242 = vpack.c.b16 %v227, %v226
    %v243 = vpack.c.b16 %v229, %v228
    %v244 = vpack.c.b16 %v231, %v230
    %v245 = vpack.c.b16 %v233, %v232
    %v246 = vpack.c.b16 %v235, %v234
    %v247 = vpack.c.b16 %v237, %v236
    %v248 = vpack.c.b16 %v239, %v238
    %v249 = vpack.c.b16 %v241, %v240
    %258 = vmatprep.subr.bf16.mxu0 0
    %259 = vmatpush1.bf16.msra.mxu0 %v242
    %260 = vmatprep.subr.bf16.mxu0 0
    %261 = vmatpush1.bf16.msra.mxu0 %v243
    %262 = vmatprep.subr.bf16.mxu0 0
    %263 = vmatpush1.bf16.msra.mxu0 %v244
    %264 = vmatprep.subr.bf16.mxu0 0
    %265 = vmatpush1.bf16.msra.mxu0 %v245
    %266 = vmatprep.subr.bf16.mxu0 0
    %267 = vmatpush1.bf16.msra.mxu0 %v246
    %268 = vmatprep.subr.bf16.mxu0 0
    %269 = vmatpush1.bf16.msra.mxu0 %v247
    %270 = vmatprep.subr.bf16.mxu0 0
    %271 = vmatpush1.bf16.msra.mxu0 %v248
    %272 = vmatprep.subr.bf16.mxu0 0
    %273 = vmatpush1.bf16.msra.mxu0 %v249
    %274 = vmatprep.subr.bf16.mxu0 0
    %275 = vmatpush1.bf16.msra.mxu0 0
    %276 = vmatprep.subr.bf16.mxu0 0
    %277 = vmatpush1.bf16.msra.mxu0 0
    %278 = vmatprep.subr.bf16.mxu0 0
    %279 = vmatpush1.bf16.msra.mxu0 0
    %280 = vmatprep.subr.bf16.mxu0 0
    %281 = vmatpush1.bf16.msra.mxu0 0
    %282 = vmatprep.subr.bf16.mxu0 0
    %283 = vmatpush1.bf16.msra.mxu0 0
    %284 = vmatprep.subr.bf16.mxu0 0
    %285 = vmatpush1.bf16.msra.mxu0 0
    %286 = vmatprep.subr.bf16.mxu0 0
    %287 = vmatpush1.bf16.msra.mxu0 0
    %288 = vmatprep.subr.bf16.mxu0 0
    %289 = vmatpush1.bf16.msra.mxu0 0
    %290 = vmatprep.mubr.bf16.mxu0 0
    %291 = vmatmul.mubr.bf16.gmra.mrb[0].mxu0 %v193
    %v292 = vpop.f32.mrb[0].mxu0
    %v293 = vadd.f32 0.0, %v292
    %v294 = vpop.f32.mrb[0].mxu0
    %v295 = vpop.f32.mrb[0].mxu0
    %v296 = vadd.f32 0.0, %v295
    %v297 = vpop.f32.mrb[0].mxu0
    %298 = vdwg.mxu0
    %p299 = scmp.eq.s32.totalorder 0, 0
    // Predicated region
    $region34: #{tpu_custom_call.1} parent=1 // pred_check
      %p300 = pneg %p299
    $region35: #{tpu_custom_call.1} parent=1 // pred_check_branch
      %302 = sbr.rel (%p300) target = $region37
    $region36: #{tpu_custom_call.1} parent=1 // pred_region
      %303 = vst [vmem:[#allocation8] sm:$0xff] %v293
      %304 = vst [vmem:[#allocation8 + $0x8] sm:$0xff] %v296
    $region37: #{tpu_custom_call.1} parent=1 // pred_fallthru
      _
    %p305 = scmp.gt.s32.totalorder 0, 0
    // Predicated region
    $region38: #{tpu_custom_call.1} parent=1 // pred_check
      %p306 = pneg %p305
    $region39: #{tpu_custom_call.1} parent=1 // pred_check_branch
      %308 = sbr.rel (%p306) target = $region41
    $region40: #{tpu_custom_call.1} parent=1 // pred_region
      %v309 = vld [vmem:[#allocation8] sm:$0xff]
      %v310 = vld [vmem:[#allocation8 + $0x8] sm:$0xff]
      %v311 = vadd.f32 %v309, %v293
      %v312 = vadd.f32 %v310, %v296
      %313 = vst [vmem:[#allocation8] sm:$0xff] %v311
      %314 = vst [vmem:[#allocation8 + $0x8] sm:$0xff] %v312
    $region41: #{tpu_custom_call.1} parent=1 // pred_fallthru
      _
    // Predicated region
    $region42: #{tpu_custom_call.1} parent=1 // pred_check
      %p315 = pneg %p299
    $region43: #{tpu_custom_call.1} parent=1 // pred_check_branch
      %317 = sbr.rel (%p315) target = $region45
    $region44: #{tpu_custom_call.1} parent=1 // pred_region
      %v318 = vld [vmem:[#allocation8] sm:$0xff]
      %v319 = vld [vmem:[#allocation8 + $0x8] sm:$0xff]
      %v320 = vld [vmem:[%s4] sm:$0x1]
      %v322 = vlaneseq
      %v323 = vshrl.u32 %v322, 7
      %v324 = vsub.s32 0, %v323
      %v325 = vrot.slane %v320, %v324
      %v327 = vadd.f32 %v318, %v325
      %v328 = vadd.f32 %v319, %v325
      %329 = vst [vmem:[#allocation8] sm:$0xff] %v327
      %330 = vst [vmem:[#allocation8 + $0x8] sm:$0xff] %v328
    $region45: #{tpu_custom_call.1} parent=1 // pred_fallthru
      _
    // Predicated region
    $region46: #{tpu_custom_call.1} parent=1 // pred_check
      _
    $region47: #{tpu_custom_call.1} parent=1 // pred_check_branch
      %332 = sbr.rel (0) target = $region49
    $region48: #{tpu_custom_call.1} parent=1 // pred_region
      %s334 = ssub.s32 256, 256
      %335 = vsyncadd [#allocation4], %s334
      %s336 = sshll.u32 [#allocation8], 4
      %s337 = int_to_ptr.vmem [resolvable:$true] %s336
      %342 = dma.vmem_to_hbm [thread:$0]  %s337, 256, %s5, [#allocation4], 128, 128, 8
    $region49: #{tpu_custom_call.1} parent=1 // pred_fallthru
      _
    // Predicated region
    $region50: #{tpu_custom_call.1} parent=1 // pred_check
      _
    $region51: #{tpu_custom_call.1} parent=1 // pred_check_branch
      %344 = sbr.rel (0) target = $region53
    $region52: #{tpu_custom_call.1} parent=1 // pred_region
      %345 = dma.done [#allocation4], 256
    $region53: #{tpu_custom_call.1} parent=1 // pred_fallthru
      _
    %346 = vsyncpa [#allocation3], 1
    %347 = vsyncpa [#allocation6], 1
    %348 = vsyncpa [#allocation4], 1

</llo_original>
